<compile_context>
chip_gen: v7x
topology: tpu7x:2x2x1
jax: 0.10.0
libtpu: 0.0.40
codegen_flags: <defaults>
</compile_context>

<pallas_src>
import math
from functools import partial

import jax
import jax.numpy as jnp
from jax.experimental import pallas as pl
from jax.experimental.pallas import tpu as pltpu


def key_kernel(x_ref, w_ref, o_ref):
    # x_ref: (tm, d_in)   w_ref: (d_in, tn)   o_ref: (tm, tn)
    o_ref[...] = jnp.dot(
        x_ref[...],
        w_ref[...],
        preferred_element_type=jnp.float32,
        precision=jax.lax.Precision.HIGHEST,
    ).astype(o_ref.dtype)


def _round_up(x, m):
    return ((x + m - 1) // m) * m


@partial(jax.jit, static_argnames=("block_m", "block_n"))
def key_forward(x, weight, *, block_m=2048, block_n=1024):
    """Computes x @ weight.T (bias-free Linear), matching PyTorch `Key`.

    Args:
      x:      (..., dim_input) activations.
      weight: (dim_attn, dim_input) -- torch Linear weight layout.
    Returns:
      (..., dim_attn), same dtype as x.
    """
    *lead, d_in = x.shape
    d_out = weight.shape[0]
    M = math.prod(lead) if lead else 1

    x2 = x.reshape(M, d_in)
    # Transpose folded into this jitted function (no standalone XLA op/call).
    w_t = weight.T.astype(x.dtype)  # (d_in, d_out)

    # Row tile: as large as possible (mem-bound), multiple of 8, but >= 2
    # blocks once M > 1024 so v7x megacore has work on both TensorCores.
    if M <= 1024:
        tm = M  # single block; block_shape equal to the full dim is allowed
    else:
        tm = min(block_m, _round_up(pl.cdiv(M, 2), 8))
    n_m = pl.cdiv(M, tm)

    # Column tile: full dim_attn when small (lane-dense, weight fully
    # resident); multiples of 128 when dim_attn is large to stay VMEM-safe.
    if d_out <= block_n or d_out % 128 != 0:
        tn = d_out
    else:
        tn = block_n
    n_n = pl.cdiv(d_out, tn)

    out = pl.pallas_call(
        key_kernel,
        out_shape=jax.ShapeDtypeStruct((M, d_out), x.dtype),
        grid_spec=pltpu.PrefetchScalarGridSpec(
            num_scalar_prefetch=0,
            grid=(n_m, n_n),
            in_specs=[
                pl.BlockSpec((tm, d_in), lambda i, j: (i, 0)),   # row tile of x
                pl.BlockSpec((d_in, tn), lambda i, j: (0, j)),   # resident weight
            ],
            out_specs=pl.BlockSpec((tm, tn), lambda i, j: (i, j)),
        ),
        compiler_params=pltpu.CompilerParams(
            dimension_semantics=("parallel", "parallel"),
        ),
    )(x2, w_t)

    return out.reshape(*lead, d_out)


def reference_key(x, weight):
    """Pure-JAX reference: F.linear(x, W) with no bias == x @ W.T."""
    return jnp.einsum(
        "...d,ad->...a", x, weight, precision=jax.lax.Precision.HIGHEST
    )


if __name__ == "__main__":
    # Small shapes consistent with the module: Key(dim_input=32, dim_attn=128).
    B, L = 2, 16
    dim_input, dim_attn = 32, 128

    root = jax.random.PRNGKey(0)
    kx, kw, kx2, kx3 = jax.random.split(root, 4)

    x = jax.random.normal(kx, (B, L, dim_input), jnp.float32)
    # Torch Linear weight layout: (out_features, in_features) = (dim_attn, dim_input)
    w = 0.1 * jax.random.normal(kw, (dim_attn, dim_input), jnp.float32)

    # --- small case: single grid step ---
    out = jax.block_until_ready(key_forward(x, w))
    ref = reference_key(x, w)
    assert out.shape == (B, L, dim_attn)
    assert jnp.allclose(out, ref, atol=1e-5, rtol=1e-5), "mismatch (small)"

    # --- ragged M, single block (M=900): no padding, no slicing ---
    x_big = jax.random.normal(kx2, (3, 300, dim_input), jnp.float32)
    out_big = jax.block_until_ready(key_forward(x_big, w))
    ref_big = reference_key(x_big, w)
    assert out_big.shape == (3, 300, dim_attn)
    assert jnp.allclose(out_big, ref_big, atol=1e-5, rtol=1e-5), "mismatch (big)"

    # --- multi-block path: M=2500 -> 2 row tiles, masked partial last block ---
    x_med = jax.random.normal(kx3, (5, 500, dim_input), jnp.float32)
    out_med = jax.block_until_ready(key_forward(x_med, w))
    ref_med = reference_key(x_med, w)
    assert out_med.shape == (5, 500, dim_attn)
    assert jnp.allclose(out_med, ref_med, atol=1e-5, rtol=1e-5), "mismatch (med)"

    print("KERNEL_OK")
</pallas_src>

<mosaic_0001>
module attributes {stable_mosaic.version = 11 : i64} {
  func.func @key_kernel(%arg0: i32, %arg1: i32, %arg2: memref<32x32xf32, #tpu.memory_space<vmem>>, %arg3: memref<32x128xf32, #tpu.memory_space<vmem>>, %arg4: memref<32x128xf32, #tpu.memory_space<vmem>>) attributes {dimension_semantics = [#tpu.dimension_semantics<parallel>, #tpu.dimension_semantics<parallel>], iteration_bounds = array<i64: 1, 1>, scalar_prefetch = 0 : i64, scratch_operands = 0 : i64, tpu.core_type = #tpu.core_type<tc>, window_params = [{transform_indices = @transform_0, window_bounds = array<i64: 32, 32>}, {transform_indices = @transform_1, window_bounds = array<i64: 32, 128>}, {transform_indices = @transform_2, window_bounds = array<i64: 32, 128>}]} {
    %c0 = arith.constant 0 : index
    %c0_0 = arith.constant 0 : index
    %0 = vector.load %arg2[%c0, %c0_0] : memref<32x32xf32, #tpu.memory_space<vmem>>, vector<32x32xf32>
    %c0_1 = arith.constant 0 : index
    %c0_2 = arith.constant 0 : index
    %1 = vector.load %arg3[%c0_1, %c0_2] : memref<32x128xf32, #tpu.memory_space<vmem>>, vector<32x128xf32>
    %cst = arith.constant dense<0.000000e+00> : vector<32x128xf32>
    %2 = tpu.matmul %0, %1, %cst {dimension_numbers = #tpu.dot_dimension_numbers<[1], [0], [0], [1], [0, 0, 1, 1], [], []>, precision = #tpu.contract_precision<fp32>} : vector<32x32xf32>, vector<32x128xf32>, vector<32x128xf32> -> vector<32x128xf32>
    %c0_3 = arith.constant 0 : index
    %c0_4 = arith.constant 0 : index
    %3 = vector.load %arg4[%c0_3, %c0_4] : memref<32x128xf32, #tpu.memory_space<vmem>>, vector<32x128xf32>
    tpu.vector_store %arg4[%c0_3, %c0_4], %2 {strides = array<i32>} : memref<32x128xf32, #tpu.memory_space<vmem>>, vector<32x128xf32>,
    return
  }
  func.func @transform_0(%arg0: i32, %arg1: i32) -> (i32, i32) {
    %c0_i32 = arith.constant 0 : i32
    %c0_i32_0 = arith.constant 0 : i32
    return %arg0, %c0_i32 : i32, i32
  }
  func.func @transform_1(%arg0: i32, %arg1: i32) -> (i32, i32) {
    %c0_i32 = arith.constant 0 : i32
    %c0_i32_0 = arith.constant 0 : i32
    return %c0_i32, %arg1 : i32, i32
  }
  func.func @transform_2(%arg0: i32, %arg1: i32) -> (i32, i32) {
    %c0_i32 = arith.constant 0 : i32
    return %arg0, %arg1 : i32, i32
  }
}

</mosaic_0001>

<llo_original>
// kernel: key_forward.1
$region0: #{key_forward.1}
  #allocation0 [shape = 'u32[]', space=smem, size = 0x4, offset = 0x4, fixed_abs, tag = 'smem constant byte address 0x4 - core index']
  #allocation1 [shape = 'u32[144,128]{1,0:T(1,128)}', space=vmem, size = 0x12000, scoped, tag = 'internal scratch']
  %s0 = inlined_call_operand.hbm [shape: f32[32,32], index: 0, kind: input, shape index: {}]
  %s1 = inlined_call_operand.hbm [shape: f32[32,128], index: 1, kind: input, shape index: {}]
  %s2 = inlined_call_operand.hbm [shape: f32[32,128], index: 2, kind: output, shape index: {}]
  %s3 = sld [smem:[#allocation0]]
  $region26: #{key_forward.1} parent=0
    _
  %s5 = ssub.s32 1, %s3
  %s6 = scalar_select 0, %s5, %s3
  $region1: #{key_forward.1} parent=0
    #allocation2 [shape = 'u8[16384]{0}', space=vmem, size = 0x4000, scoped, tag = 'input window, operand 0, single buffered']
    #allocation3 [shape = 's32[1]{0}', space=sflag, size = 0x4, scoped, tag = 'scoped memory for key_forward.1']
    #allocation4 [shape = 's32[1]{0}', space=sflag, size = 0x4, scoped, tag = 'scoped memory for key_forward.1']
    #allocation5 [shape = 'u8[16384]{0}', space=vmem, size = 0x4000, scoped, tag = 'input window, operand 1, single buffered']
    #allocation6 [shape = 's32[1]{0}', space=sflag, size = 0x4, scoped, tag = 'scoped memory for key_forward.1']
    #allocation7 [shape = 'u8[16384]{0}', space=vmem, size = 0x4000, scoped, tag = 'output window, operand 0, single buffered']
    %7 = vsyncpa [#allocation3], 0
    %8 = vsyncpa [#allocation6], 0
    %9 = vsyncpa [#allocation4], 0
    // Predicated region
    $region2: #{key_forward.1} parent=1 // pred_check
      _
    $region3: #{key_forward.1} parent=1 // pred_check_branch
      %11 = sbr.rel (0) target = $region5
    $region4: #{key_forward.1} parent=1 // pred_region
      %s13 = ssub.s32 512, 512
      %14 = vsyncadd [#allocation3], %s13
      %s15 = sshll.u32 [#allocation2], 4
      %s16 = int_to_ptr.vmem [resolvable:$true] %s15
      %21 = dma.hbm_to_vmem [thread:$0]  %s0, 512, %s16, [#allocation3], 128, 128, 8
    $region5: #{key_forward.1} parent=1 // pred_fallthru
      _
    // Predicated region
    $region6: #{key_forward.1} parent=1 // pred_check
      _
    $region7: #{key_forward.1} parent=1 // pred_check_branch
      %23 = sbr.rel (0) target = $region9
    $region8: #{key_forward.1} parent=1 // pred_region
      %s25 = ssub.s32 512, 512
      %26 = vsyncadd [#allocation6], %s25
      %s27 = sshll.u32 [#allocation5], 4
      %s28 = int_to_ptr.vmem [resolvable:$true] %s27
      %33 = dma.hbm_to_vmem [thread:$0]  %s1, 512, %s28, [#allocation6], 128, 128, 8
    $region9: #{key_forward.1} parent=1 // pred_fallthru
      _
    // Predicated region
    $region10: #{key_forward.1} parent=1 // pred_check
      _
    $region11: #{key_forward.1} parent=1 // pred_check_branch
      %35 = sbr.rel (0) target = $region13
    $region12: #{key_forward.1} parent=1 // pred_region
      %36 = dma.done [#allocation3], 512
    $region13: #{key_forward.1} parent=1 // pred_fallthru
      _
    // Predicated region
    $region14: #{key_forward.1} parent=1 // pred_check
      _
    $region15: #{key_forward.1} parent=1 // pred_check_branch
      %38 = sbr.rel (0) target = $region17
    $region16: #{key_forward.1} parent=1 // pred_region
      %39 = dma.done [#allocation6], 512
    $region17: #{key_forward.1} parent=1 // pred_fallthru
      _
    %v40 = vld [vmem:[#allocation2] sm:$0xff]
    %v41 = vld [vmem:[#allocation2 + $0x8] sm:$0xff]
    %v42 = vld [vmem:[#allocation2 + $0x10] sm:$0xff]
    %v43 = vld [vmem:[#allocation2 + $0x18] sm:$0xff]
    %v44 = vld [vmem:[#allocation5] sm:$0xff]
    %v45 = vld [vmem:[#allocation5 + $0x8] sm:$0xff]
    %v46 = vld [vmem:[#allocation5 + $0x10] sm:$0xff]
    %v47 = vld [vmem:[#allocation5 + $0x18] sm:$0xff]
    %vm48 = vcmask 261120
    %v50 = vsel %vm48, %v40, 0
    %v53 = vsel %vm48, %v41, 0
    %v56 = vsel %vm48, %v42, 0
    %v59 = vsel %vm48, %v43, 0
    %61 = vmatprep.subr.mxu0 0.0
    %v62 = vand.u32 %v44, 4294901760
    %63 = vmatpush1.msra.mxu0 %v62
    %64 = vmatprep.subr.mxu0 0.0
    %v65 = vand.u32 %v45, 4294901760
    %66 = vmatpush1.msra.mxu0 %v65
    %67 = vmatprep.subr.mxu0 0.0
    %v68 = vand.u32 %v46, 4294901760
    %69 = vmatpush1.msra.mxu0 %v68
    %70 = vmatprep.subr.mxu0 0.0
    %v71 = vand.u32 %v47, 4294901760
    %72 = vmatpush1.msra.mxu0 %v71
    %73 = vmatprep.subr.mxu0 0.0
    %74 = vmatpush1.msra.mxu0 0.0
    %75 = vmatprep.subr.mxu0 0.0
    %76 = vmatpush1.msra.mxu0 0.0
    %77 = vmatprep.subr.mxu0 0.0
    %78 = vmatpush1.msra.mxu0 0.0
    %79 = vmatprep.subr.mxu0 0.0
    %80 = vmatpush1.msra.mxu0 0.0
    %81 = vmatprep.subr.mxu0 0.0
    %82 = vmatpush1.msra.mxu0 0.0
    %83 = vmatprep.subr.mxu0 0.0
    %84 = vmatpush1.msra.mxu0 0.0
    %85 = vmatprep.subr.mxu0 0.0
    %86 = vmatpush1.msra.mxu0 0.0
    %87 = vmatprep.subr.mxu0 0.0
    %88 = vmatpush1.msra.mxu0 0.0
    %89 = vmatprep.subr.mxu0 0.0
    %90 = vmatpush1.msra.mxu0 0.0
    %91 = vmatprep.subr.mxu0 0.0
    %92 = vmatpush1.msra.mxu0 0.0
    %93 = vmatprep.subr.mxu0 0.0
    %94 = vmatpush1.msra.mxu0 0.0
    %95 = vmatprep.subr.mxu0 0.0
    %96 = vmatpush1.msra.mxu0 0.0
    %97 = vmatprep.subr.mxu0 0.0
    %98 = vmatpush1.msra.mxu0 0.0
    %99 = vmatprep.subr.mxu0 0.0
    %100 = vmatpush1.msra.mxu0 0.0
    %101 = vmatprep.subr.mxu0 0.0
    %102 = vmatpush1.msra.mxu0 0.0
    %103 = vmatprep.subr.mxu0 0.0
    %104 = vmatpush1.msra.mxu0 0.0
    %105 = vmatprep.subr.mxu0 0.0
    %106 = vmatpush1.msra.mxu0 0.0
    %107 = vmatprep.subr.mxu0 0.0
    %108 = vmatpush1.msra.mxu0 0.0
    %109 = vmatprep.subr.mxu0 0.0
    %110 = vmatpush1.msra.mxu0 0.0
    %111 = vmatprep.subr.mxu0 0.0
    %112 = vmatpush1.msra.mxu0 0.0
    %113 = vmatprep.subr.mxu0 0.0
    %114 = vmatpush1.msra.mxu0 0.0
    %115 = vmatprep.subr.mxu0 0.0
    %116 = vmatpush1.msra.mxu0 0.0
    %117 = vmatprep.subr.mxu0 0.0
    %118 = vmatpush1.msra.mxu0 0.0
    %119 = vmatprep.subr.mxu0 0.0
    %120 = vmatpush1.msra.mxu0 0.0
    %121 = vmatprep.subr.mxu0 0.0
    %122 = vmatpush1.msra.mxu0 0.0
    %123 = vmatprep.subr.mxu0 0.0
    %124 = vmatpush1.msra.mxu0 0.0
    %125 = vmatprep.subr.mxu0 0.0
    %126 = vmatpush1.msra.mxu0 0.0
    %127 = vmatprep.subr.mxu0 0.0
    %128 = vmatpush1.msra.mxu0 0.0
    %129 = vmatprep.mubr.f32.mxu0 0.0
    %v130 = vand.u32 %v50, 4294901760
    %v131 = vsub.f32 %v50, %v130
    %v132 = vand.u32 %v131, 4294901760
    %v133 = vsub.f32 %v131, %v132
    %v134 = vand.u32 %v133, 4294901760
    %135 = vmatmul.mubr.f32.gmra.mrb[0].mxu0 %v134
    %v136 = vpop.f32.mrb[0].mxu0
    %v137 = vadd.f32 0.0, %v136
    %v138 = vpop.f32.mrb[0].mxu0
    %139 = vmatprep.mubr.f32.mxu0 0.0
    %v140 = vand.u32 %v53, 4294901760
    %v141 = vsub.f32 %v53, %v140
    %v142 = vand.u32 %v141, 4294901760
    %v143 = vsub.f32 %v141, %v142
    %v144 = vand.u32 %v143, 4294901760
    %145 = vmatmul.mubr.f32.gmra.mrb[0].mxu0 %v144
    %v146 = vpop.f32.mrb[0].mxu0
    %v147 = vadd.f32 0.0, %v146
    %v148 = vpop.f32.mrb[0].mxu0
    %149 = vmatprep.mubr.f32.mxu0 0.0
    %v150 = vand.u32 %v56, 4294901760
    %v151 = vsub.f32 %v56, %v150
    %v152 = vand.u32 %v151, 4294901760
    %v153 = vsub.f32 %v151, %v152
    %v154 = vand.u32 %v153, 4294901760
    %155 = vmatmul.mubr.f32.gmra.mrb[0].mxu0 %v154
    %v156 = vpop.f32.mrb[0].mxu0
    %v157 = vadd.f32 0.0, %v156
    %v158 = vpop.f32.mrb[0].mxu0
    %159 = vmatprep.mubr.f32.mxu0 0.0
    %v160 = vand.u32 %v59, 4294901760
    %v161 = vsub.f32 %v59, %v160
    %v162 = vand.u32 %v161, 4294901760
    %v163 = vsub.f32 %v161, %v162
    %v164 = vand.u32 %v163, 4294901760
    %165 = vmatmul.mubr.f32.gmra.mrb[0].mxu0 %v164
    %v166 = vpop.f32.mrb[0].mxu0
    %v167 = vadd.f32 0.0, %v166
    %v168 = vpop.f32.mrb[0].mxu0
    %169 = vdwg.mxu0
    %170 = vmatprep.subr.mxu0 0.0
    %v171 = vand.u32 %v44, 4294901760
    %v172 = vsub.f32 %v44, %v171
    %v173 = vand.u32 %v172, 4294901760
    %v174 = vsub.f32 %v172, %v173
    %v175 = vand.u32 %v174, 4294901760
    %176 = vmatpush1.msra.mxu0 %v175
    %177 = vmatprep.subr.mxu0 0.0
    %v178 = vand.u32 %v45, 4294901760
    %v179 = vsub.f32 %v45, %v178
    %v180 = vand.u32 %v179, 4294901760
    %v181 = vsub.f32 %v179, %v180
    %v182 = vand.u32 %v181, 4294901760
    %183 = vmatpush1.msra.mxu0 %v182
    %184 = vmatprep.subr.mxu0 0.0
    %v185 = vand.u32 %v46, 4294901760
    %v186 = vsub.f32 %v46, %v185
    %v187 = vand.u32 %v186, 4294901760
    %v188 = vsub.f32 %v186, %v187
    %v189 = vand.u32 %v188, 4294901760
    %190 = vmatpush1.msra.mxu0 %v189
    %191 = vmatprep.subr.mxu0 0.0
    %v192 = vand.u32 %v47, 4294901760
    %v193 = vsub.f32 %v47, %v192
    %v194 = vand.u32 %v193, 4294901760
    %v195 = vsub.f32 %v193, %v194
    %v196 = vand.u32 %v195, 4294901760
    %197 = vmatpush1.msra.mxu0 %v196
    %198 = vmatprep.subr.mxu0 0.0
    %199 = vmatpush1.msra.mxu0 0.0
    %200 = vmatprep.subr.mxu0 0.0
    %201 = vmatpush1.msra.mxu0 0.0
    %202 = vmatprep.subr.mxu0 0.0
    %203 = vmatpush1.msra.mxu0 0.0
    %204 = vmatprep.subr.mxu0 0.0
    %205 = vmatpush1.msra.mxu0 0.0
    %206 = vmatprep.subr.mxu0 0.0
    %207 = vmatpush1.msra.mxu0 0.0
    %208 = vmatprep.subr.mxu0 0.0
    %209 = vmatpush1.msra.mxu0 0.0
    %210 = vmatprep.subr.mxu0 0.0
    %211 = vmatpush1.msra.mxu0 0.0
    %212 = vmatprep.subr.mxu0 0.0
    %213 = vmatpush1.msra.mxu0 0.0
    %214 = vmatprep.subr.mxu0 0.0
    %215 = vmatpush1.msra.mxu0 0.0
    %216 = vmatprep.subr.mxu0 0.0
    %217 = vmatpush1.msra.mxu0 0.0
    %218 = vmatprep.subr.mxu0 0.0
    %219 = vmatpush1.msra.mxu0 0.0
    %220 = vmatprep.subr.mxu0 0.0
    %221 = vmatpush1.msra.mxu0 0.0
    %222 = vmatprep.subr.mxu0 0.0
    %223 = vmatpush1.msra.mxu0 0.0
    %224 = vmatprep.subr.mxu0 0.0
    %225 = vmatpush1.msra.mxu0 0.0
    %226 = vmatprep.subr.mxu0 0.0
    %227 = vmatpush1.msra.mxu0 0.0
    %228 = vmatprep.subr.mxu0 0.0
    %229 = vmatpush1.msra.mxu0 0.0
    %230 = vmatprep.subr.mxu0 0.0
    %231 = vmatpush1.msra.mxu0 0.0
    %232 = vmatprep.subr.mxu0 0.0
    %233 = vmatpush1.msra.mxu0 0.0
    %234 = vmatprep.subr.mxu0 0.0
    %235 = vmatpush1.msra.mxu0 0.0
    %236 = vmatprep.subr.mxu0 0.0
    %237 = vmatpush1.msra.mxu0 0.0
    %238 = vmatprep.subr.mxu0 0.0
    %239 = vmatpush1.msra.mxu0 0.0
    %240 = vmatprep.subr.mxu0 0.0
    %241 = vmatpush1.msra.mxu0 0.0
    %242 = vmatprep.subr.mxu0 0.0
    %243 = vmatpush1.msra.mxu0 0.0
    %244 = vmatprep.subr.mxu0 0.0
    %245 = vmatpush1.msra.mxu0 0.0
    %246 = vmatprep.subr.mxu0 0.0
    %247 = vmatpush1.msra.mxu0 0.0
    %248 = vmatprep.subr.mxu0 0.0
    %249 = vmatpush1.msra.mxu0 0.0
    %250 = vmatprep.subr.mxu0 0.0
    %251 = vmatpush1.msra.mxu0 0.0
    %252 = vmatprep.subr.mxu0 0.0
    %253 = vmatpush1.msra.mxu0 0.0
    %254 = vmatprep.mubr.f32.mxu0 0.0
    %v255 = vand.u32 %v50, 4294901760
    %256 = vmatmul.mubr.f32.gmra.mrb[0].mxu0 %v255
    %v257 = vpop.f32.mrb[0].mxu0
    %v258 = vadd.f32 %v137, %v257
    %v259 = vpop.f32.mrb[0].mxu0
    %260 = vmatprep.mubr.f32.mxu0 0.0
    %v261 = vand.u32 %v53, 4294901760
    %262 = vmatmul.mubr.f32.gmra.mrb[0].mxu0 %v261
    %v263 = vpop.f32.mrb[0].mxu0
    %v264 = vadd.f32 %v147, %v263
    %v265 = vpop.f32.mrb[0].mxu0
    %266 = vmatprep.mubr.f32.mxu0 0.0
    %v267 = vand.u32 %v56, 4294901760
    %268 = vmatmul.mubr.f32.gmra.mrb[0].mxu0 %v267
    %v269 = vpop.f32.mrb[0].mxu0
    %v270 = vadd.f32 %v157, %v269
    %v271 = vpop.f32.mrb[0].mxu0
    %272 = vmatprep.mubr.f32.mxu0 0.0
    %v273 = vand.u32 %v59, 4294901760
    %274 = vmatmul.mubr.f32.gmra.mrb[0].mxu0 %v273
    %v275 = vpop.f32.mrb[0].mxu0
    %v276 = vadd.f32 %v167, %v275
    %v277 = vpop.f32.mrb[0].mxu0
    %278 = vdwg.mxu0
    %279 = vmatprep.subr.mxu0 0.0
    %v280 = vand.u32 %v44, 4294901760
    %v281 = vsub.f32 %v44, %v280
    %282 = vmatpush1.msra.mxu0 %v281
    %283 = vmatprep.subr.mxu0 0.0
    %v284 = vand.u32 %v45, 4294901760
    %v285 = vsub.f32 %v45, %v284
    %286 = vmatpush1.msra.mxu0 %v285
    %287 = vmatprep.subr.mxu0 0.0
    %v288 = vand.u32 %v46, 4294901760
    %v289 = vsub.f32 %v46, %v288
    %290 = vmatpush1.msra.mxu0 %v289
    %291 = vmatprep.subr.mxu0 0.0
    %v292 = vand.u32 %v47, 4294901760
    %v293 = vsub.f32 %v47, %v292
    %294 = vmatpush1.msra.mxu0 %v293
    %295 = vmatprep.subr.mxu0 0.0
    %296 = vmatpush1.msra.mxu0 0.0
    %297 = vmatprep.subr.mxu0 0.0
    %298 = vmatpush1.msra.mxu0 0.0
    %299 = vmatprep.subr.mxu0 0.0
    %300 = vmatpush1.msra.mxu0 0.0
    %301 = vmatprep.subr.mxu0 0.0
    %302 = vmatpush1.msra.mxu0 0.0
    %303 = vmatprep.subr.mxu0 0.0
    %304 = vmatpush1.msra.mxu0 0.0
    %305 = vmatprep.subr.mxu0 0.0
    %306 = vmatpush1.msra.mxu0 0.0
    %307 = vmatprep.subr.mxu0 0.0
    %308 = vmatpush1.msra.mxu0 0.0
    %309 = vmatprep.subr.mxu0 0.0
    %310 = vmatpush1.msra.mxu0 0.0
    %311 = vmatprep.subr.mxu0 0.0
    %312 = vmatpush1.msra.mxu0 0.0
    %313 = vmatprep.subr.mxu0 0.0
    %314 = vmatpush1.msra.mxu0 0.0
    %315 = vmatprep.subr.mxu0 0.0
    %316 = vmatpush1.msra.mxu0 0.0
    %317 = vmatprep.subr.mxu0 0.0
    %318 = vmatpush1.msra.mxu0 0.0
    %319 = vmatprep.subr.mxu0 0.0
    %320 = vmatpush1.msra.mxu0 0.0
    %321 = vmatprep.subr.mxu0 0.0
    %322 = vmatpush1.msra.mxu0 0.0
    %323 = vmatprep.subr.mxu0 0.0
    %324 = vmatpush1.msra.mxu0 0.0
    %325 = vmatprep.subr.mxu0 0.0
    %326 = vmatpush1.msra.mxu0 0.0
    %327 = vmatprep.subr.mxu0 0.0
    %328 = vmatpush1.msra.mxu0 0.0
    %329 = vmatprep.subr.mxu0 0.0
    %330 = vmatpush1.msra.mxu0 0.0
    %331 = vmatprep.subr.mxu0 0.0
    %332 = vmatpush1.msra.mxu0 0.0
    %333 = vmatprep.subr.mxu0 0.0
    %334 = vmatpush1.msra.mxu0 0.0
    %335 = vmatprep.subr.mxu0 0.0
    %336 = vmatpush1.msra.mxu0 0.0
    %337 = vmatprep.subr.mxu0 0.0
    %338 = vmatpush1.msra.mxu0 0.0
    %339 = vmatprep.subr.mxu0 0.0
    %340 = vmatpush1.msra.mxu0 0.0
    %341 = vmatprep.subr.mxu0 0.0
    %342 = vmatpush1.msra.mxu0 0.0
    %343 = vmatprep.subr.mxu0 0.0
    %344 = vmatpush1.msra.mxu0 0.0
    %345 = vmatprep.subr.mxu0 0.0
    %346 = vmatpush1.msra.mxu0 0.0
    %347 = vmatprep.subr.mxu0 0.0
    %348 = vmatpush1.msra.mxu0 0.0
    %349 = vmatprep.subr.mxu0 0.0
    %350 = vmatpush1.msra.mxu0 0.0
    %351 = vmatprep.mubr.f32.mxu0 0.0
    %v352 = vand.u32 %v50, 4294901760
    %v353 = vsub.f32 %v50, %v352
    %354 = vmatmul.mubr.f32.gmra.mrb[0].mxu0 %v353
    %v355 = vpop.f32.mrb[0].mxu0
    %v356 = vadd.f32 %v258, %v355
    %v357 = vpop.f32.mrb[0].mxu0
    %358 = vmatprep.mubr.f32.mxu0 0.0
    %v359 = vand.u32 %v53, 4294901760
    %v360 = vsub.f32 %v53, %v359
    %361 = vmatmul.mubr.f32.gmra.mrb[0].mxu0 %v360
    %v362 = vpop.f32.mrb[0].mxu0
    %v363 = vadd.f32 %v264, %v362
    %v364 = vpop.f32.mrb[0].mxu0
    %365 = vmatprep.mubr.f32.mxu0 0.0
    %v366 = vand.u32 %v56, 4294901760
    %v367 = vsub.f32 %v56, %v366
    %368 = vmatmul.mubr.f32.gmra.mrb[0].mxu0 %v367
    %v369 = vpop.f32.mrb[0].mxu0
    %v370 = vadd.f32 %v270, %v369
    %v371 = vpop.f32.mrb[0].mxu0
    %372 = vmatprep.mubr.f32.mxu0 0.0
    %v373 = vand.u32 %v59, 4294901760
    %v374 = vsub.f32 %v59, %v373
    %375 = vmatmul.mubr.f32.gmra.mrb[0].mxu0 %v374
    %v376 = vpop.f32.mrb[0].mxu0
    %v377 = vadd.f32 %v276, %v376
    %v378 = vpop.f32.mrb[0].mxu0
    %379 = vdwg.mxu0
    %380 = vmatprep.subr.mxu0 0.0
    %v381 = vand.u32 %v44, 4294901760
    %382 = vmatpush1.msra.mxu0 %v381
    %383 = vmatprep.subr.mxu0 0.0
    %v384 = vand.u32 %v45, 4294901760
    %385 = vmatpush1.msra.mxu0 %v384
    %386 = vmatprep.subr.mxu0 0.0
    %v387 = vand.u32 %v46, 4294901760
    %388 = vmatpush1.msra.mxu0 %v387
    %389 = vmatprep.subr.mxu0 0.0
    %v390 = vand.u32 %v47, 4294901760
    %391 = vmatpush1.msra.mxu0 %v390
    %392 = vmatprep.subr.mxu0 0.0
    %393 = vmatpush1.msra.mxu0 0.0
    %394 = vmatprep.subr.mxu0 0.0
    %395 = vmatpush1.msra.mxu0 0.0
    %396 = vmatprep.subr.mxu0 0.0
    %397 = vmatpush1.msra.mxu0 0.0
    %398 = vmatprep.subr.mxu0 0.0
    %399 = vmatpush1.msra.mxu0 0.0
    %400 = vmatprep.subr.mxu0 0.0
    %401 = vmatpush1.msra.mxu0 0.0
    %402 = vmatprep.subr.mxu0 0.0
    %403 = vmatpush1.msra.mxu0 0.0
    %404 = vmatprep.subr.mxu0 0.0
    %405 = vmatpush1.msra.mxu0 0.0
    %406 = vmatprep.subr.mxu0 0.0
    %407 = vmatpush1.msra.mxu0 0.0
    %408 = vmatprep.subr.mxu0 0.0
    %409 = vmatpush1.msra.mxu0 0.0
    %410 = vmatprep.subr.mxu0 0.0
    %411 = vmatpush1.msra.mxu0 0.0
    %412 = vmatprep.subr.mxu0 0.0
    %413 = vmatpush1.msra.mxu0 0.0
    %414 = vmatprep.subr.mxu0 0.0
    %415 = vmatpush1.msra.mxu0 0.0
    %416 = vmatprep.subr.mxu0 0.0
    %417 = vmatpush1.msra.mxu0 0.0
    %418 = vmatprep.subr.mxu0 0.0
    %419 = vmatpush1.msra.mxu0 0.0
    %420 = vmatprep.subr.mxu0 0.0
    %421 = vmatpush1.msra.mxu0 0.0
    %422 = vmatprep.subr.mxu0 0.0
    %423 = vmatpush1.msra.mxu0 0.0
    %424 = vmatprep.subr.mxu0 0.0
    %425 = vmatpush1.msra.mxu0 0.0
    %426 = vmatprep.subr.mxu0 0.0
    %427 = vmatpush1.msra.mxu0 0.0
    %428 = vmatprep.subr.mxu0 0.0
    %429 = vmatpush1.msra.mxu0 0.0
    %430 = vmatprep.subr.mxu0 0.0
    %431 = vmatpush1.msra.mxu0 0.0
    %432 = vmatprep.subr.mxu0 0.0
    %433 = vmatpush1.msra.mxu0 0.0
    %434 = vmatprep.subr.mxu0 0.0
    %435 = vmatpush1.msra.mxu0 0.0
    %436 = vmatprep.subr.mxu0 0.0
    %437 = vmatpush1.msra.mxu0 0.0
    %438 = vmatprep.subr.mxu0 0.0
    %439 = vmatpush1.msra.mxu0 0.0
    %440 = vmatprep.subr.mxu0 0.0
    %441 = vmatpush1.msra.mxu0 0.0
    %442 = vmatprep.subr.mxu0 0.0
    %443 = vmatpush1.msra.mxu0 0.0
    %444 = vmatprep.subr.mxu0 0.0
    %445 = vmatpush1.msra.mxu0 0.0
    %446 = vmatprep.subr.mxu0 0.0
    %447 = vmatpush1.msra.mxu0 0.0
    %448 = vmatprep.mubr.f32.mxu0 0.0
    %v449 = vand.u32 %v50, 4294901760
    %v450 = vsub.f32 %v50, %v449
    %v451 = vand.u32 %v450, 4294901760
    %452 = vmatmul.mubr.f32.gmra.mrb[0].mxu0 %v451
    %v453 = vpop.f32.mrb[0].mxu0
    %v454 = vadd.f32 %v356, %v453
    %v455 = vpop.f32.mrb[0].mxu0
    %456 = vmatprep.mubr.f32.mxu0 0.0
    %v457 = vand.u32 %v53, 4294901760
    %v458 = vsub.f32 %v53, %v457
    %v459 = vand.u32 %v458, 4294901760
    %460 = vmatmul.mubr.f32.gmra.mrb[0].mxu0 %v459
    %v461 = vpop.f32.mrb[0].mxu0
    %v462 = vadd.f32 %v363, %v461
    %v463 = vpop.f32.mrb[0].mxu0
    %464 = vmatprep.mubr.f32.mxu0 0.0
    %v465 = vand.u32 %v56, 4294901760
    %v466 = vsub.f32 %v56, %v465
    %v467 = vand.u32 %v466, 4294901760
    %468 = vmatmul.mubr.f32.gmra.mrb[0].mxu0 %v467
    %v469 = vpop.f32.mrb[0].mxu0
    %v470 = vadd.f32 %v370, %v469
    %v471 = vpop.f32.mrb[0].mxu0
    %472 = vmatprep.mubr.f32.mxu0 0.0
    %v473 = vand.u32 %v59, 4294901760
    %v474 = vsub.f32 %v59, %v473
    %v475 = vand.u32 %v474, 4294901760
    %476 = vmatmul.mubr.f32.gmra.mrb[0].mxu0 %v475
    %v477 = vpop.f32.mrb[0].mxu0
    %v478 = vadd.f32 %v377, %v477
    %v479 = vpop.f32.mrb[0].mxu0
    %480 = vdwg.mxu0
    %481 = vmatprep.subr.mxu0 0.0
    %v482 = vand.u32 %v44, 4294901760
    %v483 = vsub.f32 %v44, %v482
    %v484 = vand.u32 %v483, 4294901760
    %485 = vmatpush1.msra.mxu0 %v484
    %486 = vmatprep.subr.mxu0 0.0
    %v487 = vand.u32 %v45, 4294901760
    %v488 = vsub.f32 %v45, %v487
    %v489 = vand.u32 %v488, 4294901760
    %490 = vmatpush1.msra.mxu0 %v489
    %491 = vmatprep.subr.mxu0 0.0
    %v492 = vand.u32 %v46, 4294901760
    %v493 = vsub.f32 %v46, %v492
    %v494 = vand.u32 %v493, 4294901760
    %495 = vmatpush1.msra.mxu0 %v494
    %496 = vmatprep.subr.mxu0 0.0
    %v497 = vand.u32 %v47, 4294901760
    %v498 = vsub.f32 %v47, %v497
    %v499 = vand.u32 %v498, 4294901760
    %500 = vmatpush1.msra.mxu0 %v499
    %501 = vmatprep.subr.mxu0 0.0
    %502 = vmatpush1.msra.mxu0 0.0
    %503 = vmatprep.subr.mxu0 0.0
    %504 = vmatpush1.msra.mxu0 0.0
    %505 = vmatprep.subr.mxu0 0.0
    %506 = vmatpush1.msra.mxu0 0.0
    %507 = vmatprep.subr.mxu0 0.0
    %508 = vmatpush1.msra.mxu0 0.0
    %509 = vmatprep.subr.mxu0 0.0
    %510 = vmatpush1.msra.mxu0 0.0
    %511 = vmatprep.subr.mxu0 0.0
    %512 = vmatpush1.msra.mxu0 0.0
    %513 = vmatprep.subr.mxu0 0.0
    %514 = vmatpush1.msra.mxu0 0.0
    %515 = vmatprep.subr.mxu0 0.0
    %516 = vmatpush1.msra.mxu0 0.0
    %517 = vmatprep.subr.mxu0 0.0
    %518 = vmatpush1.msra.mxu0 0.0
    %519 = vmatprep.subr.mxu0 0.0
    %520 = vmatpush1.msra.mxu0 0.0
    %521 = vmatprep.subr.mxu0 0.0
    %522 = vmatpush1.msra.mxu0 0.0
    %523 = vmatprep.subr.mxu0 0.0
    %524 = vmatpush1.msra.mxu0 0.0
    %525 = vmatprep.subr.mxu0 0.0
    %526 = vmatpush1.msra.mxu0 0.0
    %527 = vmatprep.subr.mxu0 0.0
    %528 = vmatpush1.msra.mxu0 0.0
    %529 = vmatprep.subr.mxu0 0.0
    %530 = vmatpush1.msra.mxu0 0.0
    %531 = vmatprep.subr.mxu0 0.0
    %532 = vmatpush1.msra.mxu0 0.0
    %533 = vmatprep.subr.mxu0 0.0
    %534 = vmatpush1.msra.mxu0 0.0
    %535 = vmatprep.subr.mxu0 0.0
    %536 = vmatpush1.msra.mxu0 0.0
    %537 = vmatprep.subr.mxu0 0.0
    %538 = vmatpush1.msra.mxu0 0.0
    %539 = vmatprep.subr.mxu0 0.0
    %540 = vmatpush1.msra.mxu0 0.0
    %541 = vmatprep.subr.mxu0 0.0
    %542 = vmatpush1.msra.mxu0 0.0
    %543 = vmatprep.subr.mxu0 0.0
    %544 = vmatpush1.msra.mxu0 0.0
    %545 = vmatprep.subr.mxu0 0.0
    %546 = vmatpush1.msra.mxu0 0.0
    %547 = vmatprep.subr.mxu0 0.0
    %548 = vmatpush1.msra.mxu0 0.0
    %549 = vmatprep.subr.mxu0 0.0
    %550 = vmatpush1.msra.mxu0 0.0
    %551 = vmatprep.subr.mxu0 0.0
    %552 = vmatpush1.msra.mxu0 0.0
    %553 = vmatprep.subr.mxu0 0.0
    %554 = vmatpush1.msra.mxu0 0.0
    %555 = vmatprep.subr.mxu0 0.0
    %556 = vmatpush1.msra.mxu0 0.0
    %557 = vmatprep.mubr.f32.mxu0 0.0
    %v558 = vand.u32 %v50, 4294901760
    %559 = vmatmul.mubr.f32.gmra.mrb[0].mxu0 %v558
    %v560 = vpop.f32.mrb[0].mxu0
    %v561 = vadd.f32 %v454, %v560
    %v562 = vpop.f32.mrb[0].mxu0
    %563 = vmatprep.mubr.f32.mxu0 0.0
    %v564 = vand.u32 %v53, 4294901760
    %565 = vmatmul.mubr.f32.gmra.mrb[0].mxu0 %v564
    %v566 = vpop.f32.mrb[0].mxu0
    %v567 = vadd.f32 %v462, %v566
    %v568 = vpop.f32.mrb[0].mxu0
    %569 = vmatprep.mubr.f32.mxu0 0.0
    %v570 = vand.u32 %v56, 4294901760
    %571 = vmatmul.mubr.f32.gmra.mrb[0].mxu0 %v570
    %v572 = vpop.f32.mrb[0].mxu0
    %v573 = vadd.f32 %v470, %v572
    %v574 = vpop.f32.mrb[0].mxu0
    %575 = vmatprep.mubr.f32.mxu0 0.0
    %v576 = vand.u32 %v59, 4294901760
    %577 = vmatmul.mubr.f32.gmra.mrb[0].mxu0 %v576
    %v578 = vpop.f32.mrb[0].mxu0
    %v579 = vadd.f32 %v478, %v578
    %v580 = vpop.f32.mrb[0].mxu0
    %581 = vdwg.mxu0
    %582 = vmatprep.subr.mxu0 0.0
    %v583 = vand.u32 %v44, 4294901760
    %584 = vmatpush1.msra.mxu0 %v583
    %585 = vmatprep.subr.mxu0 0.0
    %v586 = vand.u32 %v45, 4294901760
    %587 = vmatpush1.msra.mxu0 %v586
    %588 = vmatprep.subr.mxu0 0.0
    %v589 = vand.u32 %v46, 4294901760
    %590 = vmatpush1.msra.mxu0 %v589
    %591 = vmatprep.subr.mxu0 0.0
    %v592 = vand.u32 %v47, 4294901760
    %593 = vmatpush1.msra.mxu0 %v592
    %594 = vmatprep.subr.mxu0 0.0
    %595 = vmatpush1.msra.mxu0 0.0
    %596 = vmatprep.subr.mxu0 0.0
    %597 = vmatpush1.msra.mxu0 0.0
    %598 = vmatprep.subr.mxu0 0.0
    %599 = vmatpush1.msra.mxu0 0.0
    %600 = vmatprep.subr.mxu0 0.0
    %601 = vmatpush1.msra.mxu0 0.0
    %602 = vmatprep.subr.mxu0 0.0
    %603 = vmatpush1.msra.mxu0 0.0
    %604 = vmatprep.subr.mxu0 0.0
    %605 = vmatpush1.msra.mxu0 0.0
    %606 = vmatprep.subr.mxu0 0.0
    %607 = vmatpush1.msra.mxu0 0.0
    %608 = vmatprep.subr.mxu0 0.0
    %609 = vmatpush1.msra.mxu0 0.0
    %610 = vmatprep.subr.mxu0 0.0
    %611 = vmatpush1.msra.mxu0 0.0
    %612 = vmatprep.subr.mxu0 0.0
    %613 = vmatpush1.msra.mxu0 0.0
    %614 = vmatprep.subr.mxu0 0.0
    %615 = vmatpush1.msra.mxu0 0.0
    %616 = vmatprep.subr.mxu0 0.0
    %617 = vmatpush1.msra.mxu0 0.0
    %618 = vmatprep.subr.mxu0 0.0
    %619 = vmatpush1.msra.mxu0 0.0
    %620 = vmatprep.subr.mxu0 0.0
    %621 = vmatpush1.msra.mxu0 0.0
    %622 = vmatprep.subr.mxu0 0.0
    %623 = vmatpush1.msra.mxu0 0.0
    %624 = vmatprep.subr.mxu0 0.0
    %625 = vmatpush1.msra.mxu0 0.0
    %626 = vmatprep.subr.mxu0 0.0
    %627 = vmatpush1.msra.mxu0 0.0
    %628 = vmatprep.subr.mxu0 0.0
    %629 = vmatpush1.msra.mxu0 0.0
    %630 = vmatprep.subr.mxu0 0.0
    %631 = vmatpush1.msra.mxu0 0.0
    %632 = vmatprep.subr.mxu0 0.0
    %633 = vmatpush1.msra.mxu0 0.0
    %634 = vmatprep.subr.mxu0 0.0
    %635 = vmatpush1.msra.mxu0 0.0
    %636 = vmatprep.subr.mxu0 0.0
    %637 = vmatpush1.msra.mxu0 0.0
    %638 = vmatprep.subr.mxu0 0.0
    %639 = vmatpush1.msra.mxu0 0.0
    %640 = vmatprep.subr.mxu0 0.0
    %641 = vmatpush1.msra.mxu0 0.0
    %642 = vmatprep.subr.mxu0 0.0
    %643 = vmatpush1.msra.mxu0 0.0
    %644 = vmatprep.subr.mxu0 0.0
    %645 = vmatpush1.msra.mxu0 0.0
    %646 = vmatprep.subr.mxu0 0.0
    %647 = vmatpush1.msra.mxu0 0.0
    %648 = vmatprep.subr.mxu0 0.0
    %649 = vmatpush1.msra.mxu0 0.0
    %650 = vmatprep.mubr.f32.mxu0 0.0
    %v651 = vand.u32 %v50, 4294901760
    %652 = vmatmul.mubr.f32.gmra.mrb[0].mxu0 %v651
    %v653 = vpop.f32.mrb[0].mxu0
    %v654 = vadd.f32 %v561, %v653
    %v655 = vpop.f32.mrb[0].mxu0
    %656 = vmatprep.mubr.f32.mxu0 0.0
    %v657 = vand.u32 %v53, 4294901760
    %658 = vmatmul.mubr.f32.gmra.mrb[0].mxu0 %v657
    %v659 = vpop.f32.mrb[0].mxu0
    %v660 = vadd.f32 %v567, %v659
    %v661 = vpop.f32.mrb[0].mxu0
    %662 = vmatprep.mubr.f32.mxu0 0.0
    %v663 = vand.u32 %v56, 4294901760
    %664 = vmatmul.mubr.f32.gmra.mrb[0].mxu0 %v663
    %v665 = vpop.f32.mrb[0].mxu0
    %v666 = vadd.f32 %v573, %v665
    %v667 = vpop.f32.mrb[0].mxu0
    %668 = vmatprep.mubr.f32.mxu0 0.0
    %v669 = vand.u32 %v59, 4294901760
    %670 = vmatmul.mubr.f32.gmra.mrb[0].mxu0 %v669
    %v671 = vpop.f32.mrb[0].mxu0
    %v672 = vadd.f32 %v579, %v671
    %v673 = vpop.f32.mrb[0].mxu0
    %674 = vdwg.mxu0
    %675 = vst [vmem:[#allocation7] sm:$0xff] %v654
    %676 = vst [vmem:[#allocation7 + $0x8] sm:$0xff] %v660
    %677 = vst [vmem:[#allocation7 + $0x10] sm:$0xff] %v666
    %678 = vst [vmem:[#allocation7 + $0x18] sm:$0xff] %v672
    // Predicated region
    $region18: #{key_forward.1} parent=1 // pred_check
      _
    $region19: #{key_forward.1} parent=1 // pred_check_branch
      %680 = sbr.rel (0) target = $region21
    $region20: #{key_forward.1} parent=1 // pred_region
      %s682 = ssub.s32 512, 512
      %683 = vsyncadd [#allocation4], %s682
      %s684 = sshll.u32 [#allocation7], 4
      %s685 = int_to_ptr.vmem [resolvable:$true] %s684
      %690 = dma.vmem_to_hbm [thread:$0]  %s685, 512, %s2, [#allocation4], 128, 128, 8
    $region21: #{key_forward.1} parent=1 // pred_fallthru
      _
    // Predicated region
    $region22: #{key_forward.1} parent=1 // pred_check
      _
    $region23: #{key_forward.1} parent=1 // pred_check_branch
      %692 = sbr.rel (0) target = $region25
    $region24: #{key_forward.1} parent=1 // pred_region
      %693 = dma.done [#allocation4], 512
    $region25: #{key_forward.1} parent=1 // pred_fallthru
      _
    %694 = vsyncpa [#allocation3], 1
    %695 = vsyncpa [#allocation6], 1
    %696 = vsyncpa [#allocation4], 1

</llo_original>
